<compile_context>
chip_gen: v7x
topology: tpu7x:2x2x1
jax: 0.10.0
libtpu: 0.0.40
codegen_flags: <defaults>
</compile_context>

<pallas_src>
import jax
import jax.numpy as jnp
from jax import lax
from jax.experimental import pallas as pl
from jax.experimental.pallas import tpu as pltpu


def _round_up(x, m):
    return ((x + m - 1) // m) * m


def _mlp_kernel(x_ref,
                w1_ref, t1_ref,
                w2_ref, t2_ref,
                w3_ref, t3_ref,
                w4_ref, b4_ref,
                o_ref):
    # x tile is batch-major [TILE_B, D] f32; cast to bf16 here and contract
    # over D (rhs dim 1) so the MXU performs the relayout -> feature-major
    # [out, TILE_B] activations that stay lane-dense through the whole net.
    x = x_ref[...].astype(jnp.bfloat16)                         # [T, D]

    # Layer 1: Linear(D,128) + folded BN(128) + ReLU   (Dropout = identity)
    h = lax.dot_general(w1_ref[...], x,
                        dimension_numbers=(((1,), (1,)), ((), ())),
                        preferred_element_type=jnp.float32)     # [128, T]
    h = jnp.maximum(h + t1_ref[...], 0.0).astype(jnp.bfloat16)

    # Layer 2: Linear(128,64) + folded BN(64) + ReLU   (Dropout = identity)
    h = jnp.dot(w2_ref[...], h, preferred_element_type=jnp.float32)
    h = jnp.maximum(h + t2_ref[...], 0.0).astype(jnp.bfloat16)

    # Layer 3: Linear(64,32) + folded BN(32) + ReLU
    h = jnp.dot(w3_ref[...], h, preferred_element_type=jnp.float32)
    h = jnp.maximum(h + t3_ref[...], 0.0).astype(jnp.bfloat16)

    # Head: Linear(32,1) + sigmoid  ->  lane-dense [1, TILE_B] output tile.
    z = jnp.dot(w4_ref[...], h, preferred_element_type=jnp.float32) + b4_ref[...]
    # Saturating-safe sigmoid: exp + approx reciprocal both on the EUP.
    e = jnp.exp(-jnp.abs(z))
    r = pl.reciprocal(1.0 + e, approx=True)
    o_ref[...] = jnp.where(z >= 0, r, e * r)


def _vmem_bytes_estimate(tile_b, D):
    """Rough per-call VMEM footprint (double-buffered IO + live intermediates)."""
    x_io = 2 * tile_b * D * 4                      # x tiles, f32, double buffered
    out_io = 2 * tile_b * 4                        # (1, T) f32 output, double buffered
    weights = 4 * (128 * D + 64 * 128 + 32 * 64 + 32) * 2   # bf16, double buffered
    per_col = (2 * D            # x bf16
               + 6 * 128        # h1 f32 + bf16
               + 6 * 64         # h2 f32 + bf16
               + 6 * 32         # h3 f32 + bf16
               + 16)            # z / exp / recip rows
    return x_io + out_io + weights + tile_b * per_col


def fraud_detection_forward(x, params, tile_b=4096):
    """x: [B, D] float32. Returns [B, 1] float32 probabilities."""
    B, D = x.shape

    # Lane-dense tiling: tiles are always a multiple of 128 batch columns.
    tile_b = max(128, _round_up(tile_b, 128))
    if B <= tile_b:
        tile_b = max(128, _round_up(B, 128))       # single full tile, 128-aligned
    B_pad = _round_up(B, tile_b)
    num_tiles = B_pad // tile_b

    if B_pad != B:
        x = jnp.pad(x, ((0, B_pad - B), (0, 0)))   # tail pad only (no transpose/cast pass)

    w1, t1 = params["w1"], params["t1"]
    w2, t2 = params["w2"], params["t2"]
    w3, t3 = params["w3"], params["t3"]
    w4, b4 = params["w4"], params["b4"]

    def const_spec(arr):
        # Full-array block, constant index -> stays resident in VMEM.
        return pl.BlockSpec(arr.shape, lambda i: (0, 0))

    # Explicit VMEM budget: 2x headroom over the estimate, clamped so it is
    # safe on v5e (16 MiB scoped default) and never exceeds v7x's 64 MiB.
    vmem_limit = int(min(max(2 * _vmem_bytes_estimate(tile_b, D), 16 << 20), 48 << 20))

    out = pl.pallas_call(
        _mlp_kernel,
        out_shape=jax.ShapeDtypeStruct((1, B_pad), jnp.float32),
        grid=(num_tiles,),
        in_specs=[
            pl.BlockSpec((tile_b, D), lambda i: (i, 0)),   # streamed x tiles [T, D]
            const_spec(w1), const_spec(t1),
            const_spec(w2), const_spec(t2),
            const_spec(w3), const_spec(t3),
            const_spec(w4), const_spec(b4),
        ],
        out_specs=pl.BlockSpec((1, tile_b), lambda i: (0, i)),
        compiler_params=pltpu.CompilerParams(
            dimension_semantics=("parallel",),
            vmem_limit_bytes=vmem_limit),
    )(x, w1, t1, w2, t2, w3, t3, w4, b4)

    return out[:, :B].reshape(B, 1)


def make_params(input_dim, key):
    """Synthetic parameters matching the PyTorch module shapes.

    Weights use PyTorch-native [out, in] layout. BatchNorm (gamma, beta,
    running stats, eps=1e-5) is folded into the weight rows (scale) and a
    per-feature shift that also absorbs the Linear bias. Weights are bf16,
    shifts stay f32.
    """
    eps = 1e-5
    dims = [(input_dim, 128), (128, 64), (64, 32)]
    keys = jax.random.split(key, 16)
    ki = iter(range(16))
    params = {}
    for li, (din, dout) in enumerate(dims, start=1):
        w = jax.random.normal(keys[next(ki)], (dout, din), jnp.float32) * 0.1
        b = jax.random.normal(keys[next(ki)], (dout,), jnp.float32) * 0.05
        gamma = 1.0 + 0.1 * jax.random.normal(keys[next(ki)], (dout,), jnp.float32)
        beta = 0.05 * jax.random.normal(keys[next(ki)], (dout,), jnp.float32)
        run_mean = 0.1 * jnp.arange(dout, dtype=jnp.float32) / dout
        run_var = 1.0 + 0.01 * jnp.arange(dout, dtype=jnp.float32) / dout
        scale = gamma / jnp.sqrt(run_var + eps)                  # [dout]
        params[f"w{li}"] = (w * scale[:, None]).astype(jnp.bfloat16)
        params[f"t{li}"] = ((b - run_mean) * scale + beta).reshape(dout, 1)
    # Final Linear(32, 1) — no BN.
    w4 = jax.random.normal(keys[next(ki)], (1, 32), jnp.float32) * 0.1
    b4 = jax.random.normal(keys[next(ki)], (1,), jnp.float32) * 0.05
    params["w4"] = w4.astype(jnp.bfloat16)
    params["b4"] = b4.reshape(1, 1)
    return params


def _reference_forward(x, params):
    """Pure-JAX reference replicating the kernel's bf16/f32 mixed precision."""
    def layer(h, w, t):
        y = jnp.dot(h.astype(jnp.bfloat16), w.T,
                    preferred_element_type=jnp.float32) + t.reshape(1, -1)
        return jnp.maximum(y, 0.0)
    h = layer(x, params["w1"], params["t1"])
    h = layer(h, params["w2"], params["t2"])
    h = layer(h, params["w3"], params["t3"])
    z = jnp.dot(h.astype(jnp.bfloat16), params["w4"].T,
                preferred_element_type=jnp.float32) + params["b4"].reshape(1, -1)
    return jax.nn.sigmoid(z)


if __name__ == "__main__":
    input_dim = 32     # stand-in for scaler.n_features_in_
    batch = 200        # not a multiple of 128 -> exercises the padding path

    key = jax.random.PRNGKey(0)
    kx, kp = jax.random.split(key)
    x = jax.random.normal(kx, (batch, input_dim), jnp.float32)
    params = make_params(input_dim, kp)
    ref = _reference_forward(x, params)

    # Primary run: default tiling (single lane-aligned 256-wide tile here).
    out = fraud_detection_forward(x, params)
    out = jax.block_until_ready(out)
    assert out.shape == (batch, 1)
    assert jnp.allclose(out, ref, atol=1e-2, rtol=1e-2)

    # Secondary correctness check: force the multi-tile streaming grid path.
    out2 = jax.block_until_ready(fraud_detection_forward(x, params, tile_b=128))
    assert jnp.allclose(out2, ref, atol=1e-2, rtol=1e-2)

    print("KERNEL_OK")
</pallas_src>

<mosaic_0001>
module attributes {stable_mosaic.version = 11 : i64} {
  func.func @_mlp_kernel(%arg0: i32, %arg1: memref<256x32xf32, #tpu.memory_space<vmem>>, %arg2: memref<128x32xbf16, #tpu.memory_space<vmem>>, %arg3: memref<128x1xf32, #tpu.memory_space<vmem>>, %arg4: memref<64x128xbf16, #tpu.memory_space<vmem>>, %arg5: memref<64x1xf32, #tpu.memory_space<vmem>>, %arg6: memref<32x64xbf16, #tpu.memory_space<vmem>>, %arg7: memref<32x1xf32, #tpu.memory_space<vmem>>, %arg8: memref<1x32xbf16, #tpu.memory_space<vmem>>, %arg9: memref<1x1xf32, #tpu.memory_space<vmem>>, %arg10: memref<1x256xf32, #tpu.memory_space<vmem>>) attributes {dimension_semantics = [#tpu.dimension_semantics<parallel>], iteration_bounds = array<i64: 1>, scalar_prefetch = 0 : i64, scratch_operands = 0 : i64, tpu.core_type = #tpu.core_type<tc>, window_params = [{transform_indices = @transform_0, window_bounds = array<i64: 256, 32>}, {pipeline_mode = #tpu.pipeline_mode<synchronous>, transform_indices = @transform_1, window_bounds = array<i64: 128, 32>}, {pipeline_mode = #tpu.pipeline_mode<synchronous>, transform_indices = @transform_2, window_bounds = array<i64: 128, 1>}, {pipeline_mode = #tpu.pipeline_mode<synchronous>, transform_indices = @transform_3, window_bounds = array<i64: 64, 128>}, {pipeline_mode = #tpu.pipeline_mode<synchronous>, transform_indices = @transform_4, window_bounds = array<i64: 64, 1>}, {pipeline_mode = #tpu.pipeline_mode<synchronous>, transform_indices = @transform_5, window_bounds = array<i64: 32, 64>}, {pipeline_mode = #tpu.pipeline_mode<synchronous>, transform_indices = @transform_6, window_bounds = array<i64: 32, 1>}, {pipeline_mode = #tpu.pipeline_mode<synchronous>, transform_indices = @transform_7, window_bounds = array<i64: 1, 32>}, {pipeline_mode = #tpu.pipeline_mode<synchronous>, transform_indices = @transform_8, window_bounds = array<i64: 1, 1>}, {transform_indices = @transform_9, window_bounds = array<i64: 1, 256>}]} {
    %c0 = arith.constant 0 : index
    %c0_0 = arith.constant 0 : index
    %0 = vector.load %arg1[%c0, %c0_0] : memref<256x32xf32, #tpu.memory_space<vmem>>, vector<256x32xf32>
    %1 = arith.truncf %0 : vector<256x32xf32> to vector<256x32xbf16>
    %c0_1 = arith.constant 0 : index
    %c0_2 = arith.constant 0 : index
    %2 = vector.load %arg2[%c0_1, %c0_2] : memref<128x32xbf16, #tpu.memory_space<vmem>>, vector<128x32xbf16>
    %cst = arith.constant dense<0.000000e+00> : vector<128x256xf32>
    %3 = tpu.matmul %2, %1, %cst {dimension_numbers = #tpu.dot_dimension_numbers<[1], [1], [0], [0], [0, 0, 1, 0], [], []>} : vector<128x32xbf16>, vector<256x32xbf16>, vector<128x256xf32> -> vector<128x256xf32>
    %c0_3 = arith.constant 0 : index
    %c0_4 = arith.constant 0 : index
    %4 = vector.load %arg3[%c0_3, %c0_4] : memref<128x1xf32, #tpu.memory_space<vmem>>, vector<128x1xf32>
    %5 = vector.broadcast %4 : vector<128x1xf32> to vector<128x256xf32>
    %6 = arith.addf %3, %5 : vector<128x256xf32>
    %cst_5 = arith.constant 0.000000e+00 : f32
    %7 = vector.broadcast %cst_5 : f32 to vector<128x256xf32>
    %8 = arith.maximumf %6, %7 : vector<128x256xf32>
    %9 = arith.truncf %8 : vector<128x256xf32> to vector<128x256xbf16>
    %c0_6 = arith.constant 0 : index
    %c0_7 = arith.constant 0 : index
    %10 = vector.load %arg4[%c0_6, %c0_7] : memref<64x128xbf16, #tpu.memory_space<vmem>>, vector<64x128xbf16>
    %cst_8 = arith.constant dense<0.000000e+00> : vector<64x256xf32>
    %11 = tpu.matmul %10, %9, %cst_8 {dimension_numbers = #tpu.dot_dimension_numbers<[1], [0], [0], [1], [0, 0, 1, 1], [], []>} : vector<64x128xbf16>, vector<128x256xbf16>, vector<64x256xf32> -> vector<64x256xf32>
    %c0_9 = arith.constant 0 : index
    %c0_10 = arith.constant 0 : index
    %12 = vector.load %arg5[%c0_9, %c0_10] : memref<64x1xf32, #tpu.memory_space<vmem>>, vector<64x1xf32>
    %13 = vector.broadcast %12 : vector<64x1xf32> to vector<64x256xf32>
    %14 = arith.addf %11, %13 : vector<64x256xf32>
    %cst_11 = arith.constant 0.000000e+00 : f32
    %15 = vector.broadcast %cst_11 : f32 to vector<64x256xf32>
    %16 = arith.maximumf %14, %15 : vector<64x256xf32>
    %17 = arith.truncf %16 : vector<64x256xf32> to vector<64x256xbf16>
    %c0_12 = arith.constant 0 : index
    %c0_13 = arith.constant 0 : index
    %18 = vector.load %arg6[%c0_12, %c0_13] : memref<32x64xbf16, #tpu.memory_space<vmem>>, vector<32x64xbf16>
    %cst_14 = arith.constant dense<0.000000e+00> : vector<32x256xf32>
    %19 = tpu.matmul %18, %17, %cst_14 {dimension_numbers = #tpu.dot_dimension_numbers<[1], [0], [0], [1], [0, 0, 1, 1], [], []>} : vector<32x64xbf16>, vector<64x256xbf16>, vector<32x256xf32> -> vector<32x256xf32>
    %c0_15 = arith.constant 0 : index
    %c0_16 = arith.constant 0 : index
    %20 = vector.load %arg7[%c0_15, %c0_16] : memref<32x1xf32, #tpu.memory_space<vmem>>, vector<32x1xf32>
    %21 = vector.broadcast %20 : vector<32x1xf32> to vector<32x256xf32>
    %22 = arith.addf %19, %21 : vector<32x256xf32>
    %cst_17 = arith.constant 0.000000e+00 : f32
    %23 = vector.broadcast %cst_17 : f32 to vector<32x256xf32>
    %24 = arith.maximumf %22, %23 : vector<32x256xf32>
    %25 = arith.truncf %24 : vector<32x256xf32> to vector<32x256xbf16>
    %c0_18 = arith.constant 0 : index
    %c0_19 = arith.constant 0 : index
    %26 = vector.load %arg8[%c0_18, %c0_19] : memref<1x32xbf16, #tpu.memory_space<vmem>>, vector<1x32xbf16>
    %cst_20 = arith.constant dense<0.000000e+00> : vector<1x256xf32>
    %27 = tpu.matmul %26, %25, %cst_20 {dimension_numbers = #tpu.dot_dimension_numbers<[1], [0], [0], [1], [0, 0, 1, 1], [], []>} : vector<1x32xbf16>, vector<32x256xbf16>, vector<1x256xf32> -> vector<1x256xf32>
    %c0_21 = arith.constant 0 : index
    %c0_22 = arith.constant 0 : index
    %28 = vector.load %arg9[%c0_21, %c0_22] : memref<1x1xf32, #tpu.memory_space<vmem>>, vector<1x1xf32>
    %29 = vector.broadcast %28 : vector<1x1xf32> to vector<1x256xf32>
    %30 = arith.addf %27, %29 : vector<1x256xf32>
    %31 = math.absf %30 : vector<1x256xf32>
    %cst_23 = arith.constant 0.000000e+00 : f32
    %32 = vector.broadcast %cst_23 : f32 to vector<1x256xf32>
    %33 = arith.subf %32, %31 : vector<1x256xf32>
    %34 = math.exp %33 : vector<1x256xf32>
    %cst_24 = arith.constant 1.000000e+00 : f32
    %35 = vector.broadcast %cst_24 : f32 to vector<1x256xf32>
    %36 = arith.addf %35, %34 : vector<1x256xf32>
    %37 = tpu.reciprocal %36 {approx = true} : vector<1x256xf32> -> vector<1x256xf32>
    %cst_25 = arith.constant 0.000000e+00 : f32
    %38 = vector.broadcast %cst_25 : f32 to vector<1x256xf32>
    %39 = arith.cmpf oge, %30, %38 : vector<1x256xf32>
    %40 = arith.mulf %34, %37 : vector<1x256xf32>
    %41 = arith.select %39, %37, %40 : vector<1x256xi1>, vector<1x256xf32>
    %c0_26 = arith.constant 0 : index
    %c0_27 = arith.constant 0 : index
    %42 = vector.load %arg10[%c0_26, %c0_27] : memref<1x256xf32, #tpu.memory_space<vmem>>, vector<1x256xf32>
    tpu.vector_store %arg10[%c0_26, %c0_27], %41 {strides = array<i32>} : memref<1x256xf32, #tpu.memory_space<vmem>>, vector<1x256xf32>,
    return
  }
  func.func @transform_0(%arg0: i32) -> (i32, i32) {
    %c0_i32 = arith.constant 0 : i32
    %c0_i32_0 = arith.constant 0 : i32
    return %arg0, %c0_i32 : i32, i32
  }
  func.func @transform_1(%arg0: i32) -> (i32, i32) {
    %c0_i32 = arith.constant 0 : i32
    %c0_i32_0 = arith.constant 0 : i32
    %c0_i32_1 = arith.constant 0 : i32
    return %c0_i32, %c0_i32_0 : i32, i32
  }
  func.func @transform_2(%arg0: i32) -> (i32, i32) {
    %c0_i32 = arith.constant 0 : i32
    %c0_i32_0 = arith.constant 0 : i32
    %c0_i32_1 = arith.constant 0 : i32
    return %c0_i32, %c0_i32_0 : i32, i32
  }
  func.func @transform_3(%arg0: i32) -> (i32, i32) {
    %c0_i32 = arith.constant 0 : i32
    %c0_i32_0 = arith.constant 0 : i32
    %c0_i32_1 = arith.constant 0 : i32
    return %c0_i32, %c0_i32_0 : i32, i32
  }
  func.func @transform_4(%arg0: i32) -> (i32, i32) {
    %c0_i32 = arith.constant 0 : i32
    %c0_i32_0 = arith.constant 0 : i32
    %c0_i32_1 = arith.constant 0 : i32
    return %c0_i32, %c0_i32_0 : i32, i32
  }
  func.func @transform_5(%arg0: i32) -> (i32, i32) {
    %c0_i32 = arith.constant 0 : i32
    %c0_i32_0 = arith.constant 0 : i32
    %c0_i32_1 = arith.constant 0 : i32
    return %c0_i32, %c0_i32_0 : i32, i32
  }
  func.func @transform_6(%arg0: i32) -> (i32, i32) {
    %c0_i32 = arith.constant 0 : i32
    %c0_i32_0 = arith.constant 0 : i32
    %c0_i32_1 = arith.constant 0 : i32
    return %c0_i32, %c0_i32_0 : i32, i32
  }
  func.func @transform_7(%arg0: i32) -> (i32, i32) {
    %c0_i32 = arith.constant 0 : i32
    %c0_i32_0 = arith.constant 0 : i32
    %c0_i32_1 = arith.constant 0 : i32
    return %c0_i32, %c0_i32_0 : i32, i32
  }
  func.func @transform_8(%arg0: i32) -> (i32, i32) {
    %c0_i32 = arith.constant 0 : i32
    %c0_i32_0 = arith.constant 0 : i32
    %c0_i32_1 = arith.constant 0 : i32
    return %c0_i32, %c0_i32_0 : i32, i32
  }
  func.func @transform_9(%arg0: i32) -> (i32, i32) {
    %c0_i32 = arith.constant 0 : i32
    %c0_i32_0 = arith.constant 0 : i32
    return %c0_i32, %arg0 : i32, i32
  }
}

</mosaic_0001>

<llo_original>
// kernel: tpu_custom_call.1
$region0: #{tpu_custom_call.1}
  #allocation0 [shape = 'u32[]', space=smem, size = 0x4, offset = 0x4, fixed_abs, tag = 'smem constant byte address 0x4 - core index']
  #allocation1 [shape = 'u32[144,128]{1,0:T(1,128)}', space=vmem, size = 0x12000, scoped, tag = 'internal scratch']
  #allocation2 [shape = 'f32[1,1]{1,0:T(1,128)S(1)}', space=vmem, size = 0x200, scoped, tag = 'scoped memory for tpu_custom_call.1']
  %s0 = inlined_call_operand.vmem [shape: f32[256,32], index: 0, kind: input, shape index: {}]
  %s1 = inlined_call_operand.vmem [shape: bf16[128,32], index: 1, kind: input, shape index: {}]
  %s2 = inlined_call_operand.vmem [shape: f32[128,1], index: 2, kind: input, shape index: {}]
  %s3 = inlined_call_operand.vmem [shape: bf16[64,128], index: 3, kind: input, shape index: {}]
  %s4 = inlined_call_operand.vmem [shape: f32[64,1], index: 4, kind: input, shape index: {}]
  %s5 = inlined_call_operand.vmem [shape: bf16[32,64], index: 5, kind: input, shape index: {}]
  %s6 = inlined_call_operand.vmem [shape: f32[32,1], index: 6, kind: input, shape index: {}]
  %s7 = inlined_call_operand.vmem [shape: bf16[1,32], index: 7, kind: input, shape index: {}]
  %s8 = inlined_call_operand.<no memory space> [shape: f32[1,1], index: 8, kind: input, shape index: {}]
  %s9 = inlined_call_operand.hbm [shape: f32[1,256], index: 9, kind: output, shape index: {}]
  %s10 = sld [smem:[#allocation0]]
  $region46: #{tpu_custom_call.1} parent=0
    _
  %s12 = ssub.s32 1, %s10
  %s13 = scalar_select 0, %s12, %s10
  %v14 = vstv %s8
  %15 = vst [vmem:[#allocation2] sm:$0x1] %v14
  $region1: #{tpu_custom_call.1} parent=0
    #allocation3 [shape = 'u8[1024]{0}', space=vmem, size = 0x400, scoped, tag = 'output window, operand 0, single buffered']
    #allocation4 [shape = 's32[1]{0}', space=sflag, size = 0x4, scoped, tag = 'scoped memory for tpu_custom_call.1']
    %16 = vsyncpa [#allocation4], 0
    // Predicated region
    $region2: #{tpu_custom_call.1} parent=1 // pred_check
      _
    $region3: #{tpu_custom_call.1} parent=1 // pred_check_branch
      %18 = sbr.rel (0) target = $region5
    $region4: #{tpu_custom_call.1} parent=1 // pred_region
      _
    $region5: #{tpu_custom_call.1} parent=1 // pred_fallthru
      _
    // Predicated region
    $region6: #{tpu_custom_call.1} parent=1 // pred_check
      _
    $region7: #{tpu_custom_call.1} parent=1 // pred_check_branch
      %20 = sbr.rel (0) target = $region9
    $region8: #{tpu_custom_call.1} parent=1 // pred_region
      _
    $region9: #{tpu_custom_call.1} parent=1 // pred_fallthru
      _
    // Predicated region
    $region10: #{tpu_custom_call.1} parent=1 // pred_check
      _
    $region11: #{tpu_custom_call.1} parent=1 // pred_check_branch
      %22 = sbr.rel (0) target = $region13
    $region12: #{tpu_custom_call.1} parent=1 // pred_region
      _
    $region13: #{tpu_custom_call.1} parent=1 // pred_fallthru
      _
    // Predicated region
    $region14: #{tpu_custom_call.1} parent=1 // pred_check
      _
    $region15: #{tpu_custom_call.1} parent=1 // pred_check_branch
      %24 = sbr.rel (0) target = $region17
    $region16: #{tpu_custom_call.1} parent=1 // pred_region
      _
    $region17: #{tpu_custom_call.1} parent=1 // pred_fallthru
      _
    // Predicated region
    $region18: #{tpu_custom_call.1} parent=1 // pred_check
      _
    $region19: #{tpu_custom_call.1} parent=1 // pred_check_branch
      %26 = sbr.rel (0) target = $region21
    $region20: #{tpu_custom_call.1} parent=1 // pred_region
      _
    $region21: #{tpu_custom_call.1} parent=1 // pred_fallthru
      _
    // Predicated region
    $region22: #{tpu_custom_call.1} parent=1 // pred_check
      _
    $region23: #{tpu_custom_call.1} parent=1 // pred_check_branch
      %28 = sbr.rel (0) target = $region25
    $region24: #{tpu_custom_call.1} parent=1 // pred_region
      _
    $region25: #{tpu_custom_call.1} parent=1 // pred_fallthru
      _
    // Predicated region
    $region26: #{tpu_custom_call.1} parent=1 // pred_check
      _
    $region27: #{tpu_custom_call.1} parent=1 // pred_check_branch
      %30 = sbr.rel (0) target = $region29
    $region28: #{tpu_custom_call.1} parent=1 // pred_region
      _
    $region29: #{tpu_custom_call.1} parent=1 // pred_fallthru
      _
    // Predicated region
    $region30: #{tpu_custom_call.1} parent=1 // pred_check
      _
    $region31: #{tpu_custom_call.1} parent=1 // pred_check_branch
      %32 = sbr.rel (0) target = $region33
    $region32: #{tpu_custom_call.1} parent=1 // pred_region
      _
    $region33: #{tpu_custom_call.1} parent=1 // pred_fallthru
      _
    // Predicated region
    $region34: #{tpu_custom_call.1} parent=1 // pred_check
      _
    $region35: #{tpu_custom_call.1} parent=1 // pred_check_branch
      %34 = sbr.rel (0) target = $region37
    $region36: #{tpu_custom_call.1} parent=1 // pred_region
      _
    $region37: #{tpu_custom_call.1} parent=1 // pred_fallthru
      _
    %v36 = vld [vmem:[%s0] sm:$0xff]
    %v37 = vld [vmem:[%s0 + $0x8] sm:$0xff]
    %v38 = vld [vmem:[%s0 + $0x10] sm:$0xff]
    %v39 = vld [vmem:[%s0 + $0x18] sm:$0xff]
    %v40 = vld [vmem:[%s0 + $0x20] sm:$0xff]
    %v41 = vld [vmem:[%s0 + $0x28] sm:$0xff]
    %v42 = vld [vmem:[%s0 + $0x30] sm:$0xff]
    %v43 = vld [vmem:[%s0 + $0x38] sm:$0xff]
    %v44 = vld [vmem:[%s0 + $0x40] sm:$0xff]
    %v45 = vld [vmem:[%s0 + $0x48] sm:$0xff]
    %v46 = vld [vmem:[%s0 + $0x50] sm:$0xff]
    %v47 = vld [vmem:[%s0 + $0x58] sm:$0xff]
    %v48 = vld [vmem:[%s0 + $0x60] sm:$0xff]
    %v49 = vld [vmem:[%s0 + $0x68] sm:$0xff]
    %v50 = vld [vmem:[%s0 + $0x70] sm:$0xff]
    %v51 = vld [vmem:[%s0 + $0x78] sm:$0xff]
    %v52 = vld [vmem:[%s0 + $0x80] sm:$0xff]
    %v53 = vld [vmem:[%s0 + $0x88] sm:$0xff]
    %v54 = vld [vmem:[%s0 + $0x90] sm:$0xff]
    %v55 = vld [vmem:[%s0 + $0x98] sm:$0xff]
    %v56 = vld [vmem:[%s0 + $0xa0] sm:$0xff]
    %v57 = vld [vmem:[%s0 + $0xa8] sm:$0xff]
    %v58 = vld [vmem:[%s0 + $0xb0] sm:$0xff]
    %v59 = vld [vmem:[%s0 + $0xb8] sm:$0xff]
    %v60 = vld [vmem:[%s0 + $0xc0] sm:$0xff]
    %v61 = vld [vmem:[%s0 + $0xc8] sm:$0xff]
    %v62 = vld [vmem:[%s0 + $0xd0] sm:$0xff]
    %v63 = vld [vmem:[%s0 + $0xd8] sm:$0xff]
    %v64 = vld [vmem:[%s0 + $0xe0] sm:$0xff]
    %v65 = vld [vmem:[%s0 + $0xe8] sm:$0xff]
    %v66 = vld [vmem:[%s0 + $0xf0] sm:$0xff]
    %v67 = vld [vmem:[%s0 + $0xf8] sm:$0xff]
    %v68 = vpack.c.bf16 %v37, %v36
    %v69 = vpack.c.bf16 %v39, %v38
    %v70 = vpack.c.bf16 %v41, %v40
    %v71 = vpack.c.bf16 %v43, %v42
    %v72 = vpack.c.bf16 %v45, %v44
    %v73 = vpack.c.bf16 %v47, %v46
    %v74 = vpack.c.bf16 %v49, %v48
    %v75 = vpack.c.bf16 %v51, %v50
    %v76 = vpack.c.bf16 %v53, %v52
    %v77 = vpack.c.bf16 %v55, %v54
    %v78 = vpack.c.bf16 %v57, %v56
    %v79 = vpack.c.bf16 %v59, %v58
    %v80 = vpack.c.bf16 %v61, %v60
    %v81 = vpack.c.bf16 %v63, %v62
    %v82 = vpack.c.bf16 %v65, %v64
    %v83 = vpack.c.bf16 %v67, %v66
    %v84 = vld [vmem:[%s1] sm:$0xf]
    %v85 = vld [vmem:[%s1 + $0x4] sm:$0xf]
    %v86 = vld [vmem:[%s1 + $0x8] sm:$0xf]
    %v87 = vld [vmem:[%s1 + $0xc] sm:$0xf]
    %v88 = vld [vmem:[%s1 + $0x10] sm:$0xf]
    %v89 = vld [vmem:[%s1 + $0x14] sm:$0xf]
    %v90 = vld [vmem:[%s1 + $0x18] sm:$0xf]
    %v91 = vld [vmem:[%s1 + $0x1c] sm:$0xf]
    %v92 = vld [vmem:[%s1 + $0x20] sm:$0xf]
    %v93 = vld [vmem:[%s1 + $0x24] sm:$0xf]
    %v94 = vld [vmem:[%s1 + $0x28] sm:$0xf]
    %v95 = vld [vmem:[%s1 + $0x2c] sm:$0xf]
    %v96 = vld [vmem:[%s1 + $0x30] sm:$0xf]
    %v97 = vld [vmem:[%s1 + $0x34] sm:$0xf]
    %v98 = vld [vmem:[%s1 + $0x38] sm:$0xf]
    %v99 = vld [vmem:[%s1 + $0x3c] sm:$0xf]
    %v100 = vld [vmem:[%s2] sm:$0xff]
    %v101 = vld [vmem:[%s2 + $0x8] sm:$0xff]
    %v102 = vld [vmem:[%s2 + $0x10] sm:$0xff]
    %v103 = vld [vmem:[%s2 + $0x18] sm:$0xff]
    %v104 = vld [vmem:[%s2 + $0x20] sm:$0xff]
    %v105 = vld [vmem:[%s2 + $0x28] sm:$0xff]
    %v106 = vld [vmem:[%s2 + $0x30] sm:$0xff]
    %v107 = vld [vmem:[%s2 + $0x38] sm:$0xff]
    %v108 = vld [vmem:[%s2 + $0x40] sm:$0xff]
    %v109 = vld [vmem:[%s2 + $0x48] sm:$0xff]
    %v110 = vld [vmem:[%s2 + $0x50] sm:$0xff]
    %v111 = vld [vmem:[%s2 + $0x58] sm:$0xff]
    %v112 = vld [vmem:[%s2 + $0x60] sm:$0xff]
    %v113 = vld [vmem:[%s2 + $0x68] sm:$0xff]
    %v114 = vld [vmem:[%s2 + $0x70] sm:$0xff]
    %v115 = vld [vmem:[%s2 + $0x78] sm:$0xff]
    %117 = vset.pattern.permute.xlu0 0
    %118 = vperm.xlu0 %117, %v100
    %v119 = vpop.permute.xlu0 %118
    %122 = vset.pattern.permute.xlu0 0
    %123 = vperm.xlu0 %122, %v101
    %v124 = vpop.permute.xlu0 %123
    %127 = vset.pattern.permute.xlu0 0
    %128 = vperm.xlu0 %127, %v102
    %v129 = vpop.permute.xlu0 %128
    %132 = vset.pattern.permute.xlu0 0
    %133 = vperm.xlu0 %132, %v103
    %v134 = vpop.permute.xlu0 %133
    %137 = vset.pattern.permute.xlu0 0
    %138 = vperm.xlu0 %137, %v104
    %v139 = vpop.permute.xlu0 %138
    %142 = vset.pattern.permute.xlu0 0
    %143 = vperm.xlu0 %142, %v105
    %v144 = vpop.permute.xlu0 %143
    %147 = vset.pattern.permute.xlu0 0
    %148 = vperm.xlu0 %147, %v106
    %v149 = vpop.permute.xlu0 %148
    %152 = vset.pattern.permute.xlu0 0
    %153 = vperm.xlu0 %152, %v107
    %v154 = vpop.permute.xlu0 %153
    %157 = vset.pattern.permute.xlu0 0
    %158 = vperm.xlu0 %157, %v108
    %v159 = vpop.permute.xlu0 %158
    %162 = vset.pattern.permute.xlu0 0
    %163 = vperm.xlu0 %162, %v109
    %v164 = vpop.permute.xlu0 %163
    %167 = vset.pattern.permute.xlu0 0
    %168 = vperm.xlu0 %167, %v110
    %v169 = vpop.permute.xlu0 %168
    %172 = vset.pattern.permute.xlu0 0
    %173 = vperm.xlu0 %172, %v111
    %v174 = vpop.permute.xlu0 %173
    %177 = vset.pattern.permute.xlu0 0
    %178 = vperm.xlu0 %177, %v112
    %v179 = vpop.permute.xlu0 %178
    %182 = vset.pattern.permute.xlu0 0
    %183 = vperm.xlu0 %182, %v113
    %v184 = vpop.permute.xlu0 %183
    %187 = vset.pattern.permute.xlu0 0
    %188 = vperm.xlu0 %187, %v114
    %v189 = vpop.permute.xlu0 %188
    %192 = vset.pattern.permute.xlu0 0
    %193 = vperm.xlu0 %192, %v115
    %v194 = vpop.permute.xlu0 %193
    %v212 = vunpack.c.l.b16 %v84
    %v213 = vunpack.c.l.b16 %v85
    %v214 = vunpack.c.l.b16 %v86
    %v215 = vunpack.c.l.b16 %v87
    %v216 = vunpack.c.l.b16 %v88
    %v217 = vunpack.c.l.b16 %v89
    %v218 = vunpack.c.l.b16 %v90
    %v219 = vunpack.c.l.b16 %v91
    %v220 = vunpack.c.l.b16 %v92
    %v221 = vunpack.c.l.b16 %v93
    %v222 = vunpack.c.l.b16 %v94
    %v223 = vunpack.c.l.b16 %v95
    %v224 = vunpack.c.l.b16 %v96
    %v225 = vunpack.c.l.b16 %v97
    %v226 = vunpack.c.l.b16 %v98
    %v227 = vunpack.c.l.b16 %v99
    %v228 = vpack.c.b16 %v213, %v212
    %v229 = vpack.c.b16 %v215, %v214
    %v230 = vpack.c.b16 %v217, %v216
    %v231 = vpack.c.b16 %v219, %v218
    %v232 = vpack.c.b16 %v221, %v220
    %v233 = vpack.c.b16 %v223, %v222
    %v234 = vpack.c.b16 %v225, %v224
    %v235 = vpack.c.b16 %v227, %v226
    %vm236 = vcmask 261120
    %v238 = vsel %vm236, %v228, 0
    %v241 = vsel %vm236, %v229, 0
    %v244 = vsel %vm236, %v230, 0
    %v247 = vsel %vm236, %v231, 0
    %v250 = vsel %vm236, %v232, 0
    %v253 = vsel %vm236, %v233, 0
    %v256 = vsel %vm236, %v234, 0
    %v259 = vsel %vm236, %v235, 0
    %v262 = vsel %vm236, %v68, 0
    %v265 = vsel %vm236, %v69, 0
    %v268 = vsel %vm236, %v70, 0
    %v271 = vsel %vm236, %v71, 0
    %v274 = vsel %vm236, %v72, 0
    %v277 = vsel %vm236, %v73, 0
    %v280 = vsel %vm236, %v74, 0
    %v283 = vsel %vm236, %v75, 0
    %v286 = vsel %vm236, %v76, 0
    %v289 = vsel %vm236, %v77, 0
    %v292 = vsel %vm236, %v78, 0
    %v295 = vsel %vm236, %v79, 0
    %v298 = vsel %vm236, %v80, 0
    %v301 = vsel %vm236, %v81, 0
    %v304 = vsel %vm236, %v82, 0
    %v307 = vsel %vm236, %v83, 0
    %309 = vmatprep.subr.bf16.mxu0 0
    %310 = vmatpush1.bf16.xpose.msra.mxu0 %v262
    %311 = vmatprep.subr.bf16.mxu0 0
    %312 = vmatpush1.bf16.xpose.msra.mxu0 %v265
    %313 = vmatprep.subr.bf16.mxu0 0
    %314 = vmatpush1.bf16.xpose.msra.mxu0 %v268
    %315 = vmatprep.subr.bf16.mxu0 0
    %316 = vmatpush1.bf16.xpose.msra.mxu0 %v271
    %317 = vmatprep.subr.bf16.mxu0 0
    %318 = vmatpush1.bf16.xpose.msra.mxu0 %v274
    %319 = vmatprep.subr.bf16.mxu0 0
    %320 = vmatpush1.bf16.xpose.msra.mxu0 %v277
    %321 = vmatprep.subr.bf16.mxu0 0
    %322 = vmatpush1.bf16.xpose.msra.mxu0 %v280
    %323 = vmatprep.subr.bf16.mxu0 0
    %324 = vmatpush1.bf16.xpose.msra.mxu0 %v283
    %325 = vmatprep.subr.bf16.mxu0 0
    %326 = vmatpush1.bf16.xpose.msra.mxu0 %v286
    %327 = vmatprep.subr.bf16.mxu0 0
    %328 = vmatpush1.bf16.xpose.msra.mxu0 %v289
    %329 = vmatprep.subr.bf16.mxu0 0
    %330 = vmatpush1.bf16.xpose.msra.mxu0 %v292
    %331 = vmatprep.subr.bf16.mxu0 0
    %332 = vmatpush1.bf16.xpose.msra.mxu0 %v295
    %333 = vmatprep.subr.bf16.mxu0 0
    %334 = vmatpush1.bf16.xpose.msra.mxu0 %v298
    %335 = vmatprep.subr.bf16.mxu0 0
    %336 = vmatpush1.bf16.xpose.msra.mxu0 %v301
    %337 = vmatprep.subr.bf16.mxu0 0
    %338 = vmatpush1.bf16.xpose.msra.mxu0 %v304
    %339 = vmatprep.subr.bf16.mxu0 0
    %340 = vmatpush1.bf16.xpose.msra.mxu0 %v307
    %341 = vmatprep.mubr.bf16.mxu0 0
    %342 = vmatmul.mubr.bf16.gmra.mrb[0].mxu0 %v238
    %v343 = vpop.f32.mrb[0].mxu0
    %v344 = vadd.f32 %v119, %v343
    %v345 = vpop.f32.mrb[0].mxu0
    %v346 = vadd.f32 %v119, %v345
    %v347 = vpop.f32.mrb[0].mxu0
    %v348 = vadd.f32 %v124, %v347
    %v349 = vpop.f32.mrb[0].mxu0
    %v350 = vadd.f32 %v124, %v349
    %351 = vmatprep.mubr.bf16.mxu0 0
    %352 = vmatmul.mubr.bf16.gmra.mrb[0].mxu0 %v241
    %v353 = vpop.f32.mrb[0].mxu0
    %v354 = vadd.f32 %v129, %v353
    %v355 = vpop.f32.mrb[0].mxu0
    %v356 = vadd.f32 %v129, %v355
    %v357 = vpop.f32.mrb[0].mxu0
    %v358 = vadd.f32 %v134, %v357
    %v359 = vpop.f32.mrb[0].mxu0
    %v360 = vadd.f32 %v134, %v359
    %361 = vmatprep.mubr.bf16.mxu0 0
    %362 = vmatmul.mubr.bf16.gmra.mrb[0].mxu0 %v244
    %v363 = vpop.f32.mrb[0].mxu0
    %v364 = vadd.f32 %v139, %v363
    %v365 = vpop.f32.mrb[0].mxu0
    %v366 = vadd.f32 %v139, %v365
    %v367 = vpop.f32.mrb[0].mxu0
    %v368 = vadd.f32 %v144, %v367
    %v369 = vpop.f32.mrb[0].mxu0
    %v370 = vadd.f32 %v144, %v369
    %371 = vmatprep.mubr.bf16.mxu0 0
    %372 = vmatmul.mubr.bf16.gmra.mrb[0].mxu0 %v247
    %v373 = vpop.f32.mrb[0].mxu0
    %v374 = vadd.f32 %v149, %v373
    %v375 = vpop.f32.mrb[0].mxu0
    %v376 = vadd.f32 %v149, %v375
    %v377 = vpop.f32.mrb[0].mxu0
    %v378 = vadd.f32 %v154, %v377
    %v379 = vpop.f32.mrb[0].mxu0
    %v380 = vadd.f32 %v154, %v379
    %381 = vmatprep.mubr.bf16.mxu0 0
    %382 = vmatmul.mubr.bf16.gmra.mrb[0].mxu0 %v250
    %v383 = vpop.f32.mrb[0].mxu0
    %v384 = vadd.f32 %v159, %v383
    %v385 = vpop.f32.mrb[0].mxu0
    %v386 = vadd.f32 %v159, %v385
    %v387 = vpop.f32.mrb[0].mxu0
    %v388 = vadd.f32 %v164, %v387
    %v389 = vpop.f32.mrb[0].mxu0
    %v390 = vadd.f32 %v164, %v389
    %391 = vmatprep.mubr.bf16.mxu0 0
    %392 = vmatmul.mubr.bf16.gmra.mrb[0].mxu0 %v253
    %v393 = vpop.f32.mrb[0].mxu0
    %v394 = vadd.f32 %v169, %v393
    %v395 = vpop.f32.mrb[0].mxu0
    %v396 = vadd.f32 %v169, %v395
    %v397 = vpop.f32.mrb[0].mxu0
    %v398 = vadd.f32 %v174, %v397
    %v399 = vpop.f32.mrb[0].mxu0
    %v400 = vadd.f32 %v174, %v399
    %401 = vmatprep.mubr.bf16.mxu0 0
    %402 = vmatmul.mubr.bf16.gmra.mrb[0].mxu0 %v256
    %v403 = vpop.f32.mrb[0].mxu0
    %v404 = vadd.f32 %v179, %v403
    %v405 = vpop.f32.mrb[0].mxu0
    %v406 = vadd.f32 %v179, %v405
    %v407 = vpop.f32.mrb[0].mxu0
    %v408 = vadd.f32 %v184, %v407
    %v409 = vpop.f32.mrb[0].mxu0
    %v410 = vadd.f32 %v184, %v409
    %411 = vmatprep.mubr.bf16.mxu0 0
    %412 = vmatmul.mubr.bf16.gmra.mrb[0].mxu0 %v259
    %v413 = vpop.f32.mrb[0].mxu0
    %v414 = vadd.f32 %v189, %v413
    %v415 = vpop.f32.mrb[0].mxu0
    %v416 = vadd.f32 %v189, %v415
    %v417 = vpop.f32.mrb[0].mxu0
    %v418 = vadd.f32 %v194, %v417
    %v419 = vpop.f32.mrb[0].mxu0
    %v420 = vadd.f32 %v194, %v419
    %421 = vdwg.mxu0
    %v422 = vmax.f32 %v344, 0.0
    %v423 = vmax.f32 %v346, 0.0
    %v424 = vmax.f32 %v348, 0.0
    %v425 = vmax.f32 %v350, 0.0
    %v426 = vmax.f32 %v354, 0.0
    %v427 = vmax.f32 %v356, 0.0
    %v428 = vmax.f32 %v358, 0.0
    %v429 = vmax.f32 %v360, 0.0
    %v430 = vmax.f32 %v364, 0.0
    %v431 = vmax.f32 %v366, 0.0
    %v432 = vmax.f32 %v368, 0.0
    %v433 = vmax.f32 %v370, 0.0
    %v434 = vmax.f32 %v374, 0.0
    %v435 = vmax.f32 %v376, 0.0
    %v436 = vmax.f32 %v378, 0.0
    %v437 = vmax.f32 %v380, 0.0
    %v438 = vmax.f32 %v384, 0.0
    %v439 = vmax.f32 %v386, 0.0
    %v440 = vmax.f32 %v388, 0.0
    %v441 = vmax.f32 %v390, 0.0
    %v442 = vmax.f32 %v394, 0.0
    %v443 = vmax.f32 %v396, 0.0
    %v444 = vmax.f32 %v398, 0.0
    %v445 = vmax.f32 %v400, 0.0
    %v446 = vmax.f32 %v404, 0.0
    %v447 = vmax.f32 %v406, 0.0
    %v448 = vmax.f32 %v408, 0.0
    %v449 = vmax.f32 %v410, 0.0
    %v450 = vmax.f32 %v414, 0.0
    %v451 = vmax.f32 %v416, 0.0
    %v452 = vmax.f32 %v418, 0.0
    %v453 = vmax.f32 %v420, 0.0
    %v454 = vpack.c.bf16 %v424, %v422
    %v455 = vpack.c.bf16 %v425, %v423
    %v456 = vpack.c.bf16 %v428, %v426
    %v457 = vpack.c.bf16 %v429, %v427
    %v458 = vpack.c.bf16 %v432, %v430
    %v459 = vpack.c.bf16 %v433, %v431
    %v460 = vpack.c.bf16 %v436, %v434
    %v461 = vpack.c.bf16 %v437, %v435
    %v462 = vpack.c.bf16 %v440, %v438
    %v463 = vpack.c.bf16 %v441, %v439
    %v464 = vpack.c.bf16 %v444, %v442
    %v465 = vpack.c.bf16 %v445, %v443
    %v466 = vpack.c.bf16 %v448, %v446
    %v467 = vpack.c.bf16 %v449, %v447
    %v468 = vpack.c.bf16 %v452, %v450
    %v469 = vpack.c.bf16 %v453, %v451
    %v470 = vld [vmem:[%s3] sm:$0xf]
    %v471 = vld [vmem:[%s3 + $0x4] sm:$0xf]
    %v472 = vld [vmem:[%s3 + $0x8] sm:$0xf]
    %v473 = vld [vmem:[%s3 + $0xc] sm:$0xf]
    %v474 = vld [vmem:[%s3 + $0x10] sm:$0xf]
    %v475 = vld [vmem:[%s3 + $0x14] sm:$0xf]
    %v476 = vld [vmem:[%s3 + $0x18] sm:$0xf]
    %v477 = vld [vmem:[%s3 + $0x1c] sm:$0xf]
    %v478 = vld [vmem:[%s4] sm:$0xff]
    %v479 = vld [vmem:[%s4 + $0x8] sm:$0xff]
    %v480 = vld [vmem:[%s4 + $0x10] sm:$0xff]
    %v481 = vld [vmem:[%s4 + $0x18] sm:$0xff]
    %v482 = vld [vmem:[%s4 + $0x20] sm:$0xff]
    %v483 = vld [vmem:[%s4 + $0x28] sm:$0xff]
    %v484 = vld [vmem:[%s4 + $0x30] sm:$0xff]
    %v485 = vld [vmem:[%s4 + $0x38] sm:$0xff]
    %487 = vset.pattern.permute.xlu0 0
    %488 = vperm.xlu0 %487, %v478
    %v489 = vpop.permute.xlu0 %488
    %492 = vset.pattern.permute.xlu0 0
    %493 = vperm.xlu0 %492, %v479
    %v494 = vpop.permute.xlu0 %493
    %497 = vset.pattern.permute.xlu0 0
    %498 = vperm.xlu0 %497, %v480
    %v499 = vpop.permute.xlu0 %498
    %502 = vset.pattern.permute.xlu0 0
    %503 = vperm.xlu0 %502, %v481
    %v504 = vpop.permute.xlu0 %503
    %507 = vset.pattern.permute.xlu0 0
    %508 = vperm.xlu0 %507, %v482
    %v509 = vpop.permute.xlu0 %508
    %512 = vset.pattern.permute.xlu0 0
    %513 = vperm.xlu0 %512, %v483
    %v514 = vpop.permute.xlu0 %513
    %517 = vset.pattern.permute.xlu0 0
    %518 = vperm.xlu0 %517, %v484
    %v519 = vpop.permute.xlu0 %518
    %522 = vset.pattern.permute.xlu0 0
    %523 = vperm.xlu0 %522, %v485
    %v524 = vpop.permute.xlu0 %523
    %v534 = vunpack.c.l.b16 %v470
    %v535 = vunpack.c.l.b16 %v471
    %v536 = vunpack.c.l.b16 %v472
    %v537 = vunpack.c.l.b16 %v473
    %v538 = vunpack.c.l.b16 %v474
    %v539 = vunpack.c.l.b16 %v475
    %v540 = vunpack.c.l.b16 %v476
    %v541 = vunpack.c.l.b16 %v477
    %v542 = vpack.c.b16 %v535, %v534
    %v543 = vpack.c.b16 %v537, %v536
    %v544 = vpack.c.b16 %v539, %v538
    %v545 = vpack.c.b16 %v541, %v540
    %550 = vmatprep.subr.bf16.mxu0 %v455
    %551 = vmatpush1.bf16.msra.mxu0 %v454
    %552 = vmatprep.subr.bf16.mxu0 %v457
    %553 = vmatpush1.bf16.msra.mxu0 %v456
    %554 = vmatprep.subr.bf16.mxu0 %v459
    %555 = vmatpush1.bf16.msra.mxu0 %v458
    %556 = vmatprep.subr.bf16.mxu0 %v461
    %557 = vmatpush1.bf16.msra.mxu0 %v460
    %558 = vmatprep.subr.bf16.mxu0 %v463
    %559 = vmatpush1.bf16.msra.mxu0 %v462
    %560 = vmatprep.subr.bf16.mxu0 %v465
    %561 = vmatpush1.bf16.msra.mxu0 %v464
    %562 = vmatprep.subr.bf16.mxu0 %v467
    %563 = vmatpush1.bf16.msra.mxu0 %v466
    %564 = vmatprep.subr.bf16.mxu0 %v469
    %565 = vmatpush1.bf16.msra.mxu0 %v468
    %566 = vmatprep.subr.bf16.mxu0 0
    %567 = vmatpush1.bf16.msra.mxu0 0
    %568 = vmatprep.subr.bf16.mxu0 0
    %569 = vmatpush1.bf16.msra.mxu0 0
    %570 = vmatprep.subr.bf16.mxu0 0
    %571 = vmatpush1.bf16.msra.mxu0 0
    %572 = vmatprep.subr.bf16.mxu0 0
    %573 = vmatpush1.bf16.msra.mxu0 0
    %574 = vmatprep.subr.bf16.mxu0 0
    %575 = vmatpush1.bf16.msra.mxu0 0
    %576 = vmatprep.subr.bf16.mxu0 0
    %577 = vmatpush1.bf16.msra.mxu0 0
    %578 = vmatprep.subr.bf16.mxu0 0
    %579 = vmatpush1.bf16.msra.mxu0 0
    %580 = vmatprep.subr.bf16.mxu0 0
    %581 = vmatpush1.bf16.msra.mxu0 0
    %582 = vmatprep.mubr.bf16.mxu0 0
    %583 = vmatmul.mubr.bf16.gmra.mrb[0].mxu0 %v542
    %v584 = vpop.f32.mrb[0].mxu0
    %v585 = vadd.f32 %v489, %v584
    %v586 = vpop.f32.mrb[0].mxu0
    %v587 = vadd.f32 %v489, %v586
    %v588 = vpop.f32.mrb[0].mxu0
    %v589 = vadd.f32 %v494, %v588
    %v590 = vpop.f32.mrb[0].mxu0
    %v591 = vadd.f32 %v494, %v590
    %592 = vmatprep.mubr.bf16.mxu0 0
    %593 = vmatmul.mubr.bf16.gmra.mrb[0].mxu0 %v543
    %v594 = vpop.f32.mrb[0].mxu0
    %v595 = vadd.f32 %v499, %v594
    %v596 = vpop.f32.mrb[0].mxu0
    %v597 = vadd.f32 %v499, %v596
    %v598 = vpop.f32.mrb[0].mxu0
    %v599 = vadd.f32 %v504, %v598
    %v600 = vpop.f32.mrb[0].mxu0
    %v601 = vadd.f32 %v504, %v600
    %602 = vmatprep.mubr.bf16.mxu0 0
    %603 = vmatmul.mubr.bf16.gmra.mrb[0].mxu0 %v544
    %v604 = vpop.f32.mrb[0].mxu0
    %v605 = vadd.f32 %v509, %v604
    %v606 = vpop.f32.mrb[0].mxu0
    %v607 = vadd.f32 %v509, %v606
    %v608 = vpop.f32.mrb[0].mxu0
    %v609 = vadd.f32 %v514, %v608
    %v610 = vpop.f32.mrb[0].mxu0
    %v611 = vadd.f32 %v514, %v610
    %612 = vmatprep.mubr.bf16.mxu0 0
    %613 = vmatmul.mubr.bf16.gmra.mrb[0].mxu0 %v545
    %v614 = vpop.f32.mrb[0].mxu0
    %v615 = vadd.f32 %v519, %v614
    %v616 = vpop.f32.mrb[0].mxu0
    %v617 = vadd.f32 %v519, %v616
    %v618 = vpop.f32.mrb[0].mxu0
    %v619 = vadd.f32 %v524, %v618
    %v620 = vpop.f32.mrb[0].mxu0
    %v621 = vadd.f32 %v524, %v620
    %622 = vdwg.mxu0
    %v623 = vmax.f32 %v585, 0.0
    %v624 = vmax.f32 %v587, 0.0
    %v625 = vmax.f32 %v589, 0.0
    %v626 = vmax.f32 %v591, 0.0
    %v627 = vmax.f32 %v595, 0.0
    %v628 = vmax.f32 %v597, 0.0
    %v629 = vmax.f32 %v599, 0.0
    %v630 = vmax.f32 %v601, 0.0
    %v631 = vmax.f32 %v605, 0.0
    %v632 = vmax.f32 %v607, 0.0
    %v633 = vmax.f32 %v609, 0.0
    %v634 = vmax.f32 %v611, 0.0
    %v635 = vmax.f32 %v615, 0.0
    %v636 = vmax.f32 %v617, 0.0
    %v637 = vmax.f32 %v619, 0.0
    %v638 = vmax.f32 %v621, 0.0
    %v639 = vpack.c.bf16 %v625, %v623
    %v640 = vpack.c.bf16 %v626, %v624
    %v641 = vpack.c.bf16 %v629, %v627
    %v642 = vpack.c.bf16 %v630, %v628
    %v643 = vpack.c.bf16 %v633, %v631
    %v644 = vpack.c.bf16 %v634, %v632
    %v645 = vpack.c.bf16 %v637, %v635
    %v646 = vpack.c.bf16 %v638, %v636
    %v647 = vld [vmem:[%s5] sm:$0xf]
    %v648 = vld [vmem:[%s5 + $0x4] sm:$0xf]
    %v649 = vld [vmem:[%s5 + $0x8] sm:$0xf]
    %v650 = vld [vmem:[%s5 + $0xc] sm:$0xf]
    %v651 = vld [vmem:[%s6] sm:$0xff]
    %v652 = vld [vmem:[%s6 + $0x8] sm:$0xff]
    %v653 = vld [vmem:[%s6 + $0x10] sm:$0xff]
    %v654 = vld [vmem:[%s6 + $0x18] sm:$0xff]
    %656 = vset.pattern.permute.xlu0 0
    %657 = vperm.xlu0 %656, %v651
    %v658 = vpop.permute.xlu0 %657
    %661 = vset.pattern.permute.xlu0 0
    %662 = vperm.xlu0 %661, %v652
    %v663 = vpop.permute.xlu0 %662
    %666 = vset.pattern.permute.xlu0 0
    %667 = vperm.xlu0 %666, %v653
    %v668 = vpop.permute.xlu0 %667
    %671 = vset.pattern.permute.xlu0 0
    %672 = vperm.xlu0 %671, %v654
    %v673 = vpop.permute.xlu0 %672
    %v679 = vunpack.c.l.b16 %v647
    %v680 = vunpack.c.l.b16 %v648
    %v681 = vunpack.c.l.b16 %v649
    %v682 = vunpack.c.l.b16 %v650
    %v683 = vpack.c.b16 %v680, %v679
    %v684 = vpack.c.b16 %v682, %v681
    %vm685 = vcmask 523264
    %v687 = vsel %vm685, %v683, 0
    %v690 = vsel %vm685, %v684, 0
    %692 = vmatprep.subr.bf16.mxu0 %v640
    %693 = vmatpush1.bf16.msra.mxu0 %v639
    %694 = vmatprep.subr.bf16.mxu0 %v642
    %695 = vmatpush1.bf16.msra.mxu0 %v641
    %696 = vmatprep.subr.bf16.mxu0 %v644
    %697 = vmatpush1.bf16.msra.mxu0 %v643
    %698 = vmatprep.subr.bf16.mxu0 %v646
    %699 = vmatpush1.bf16.msra.mxu0 %v645
    %700 = vmatprep.subr.bf16.mxu0 0
    %701 = vmatpush1.bf16.msra.mxu0 0
    %702 = vmatprep.subr.bf16.mxu0 0
    %703 = vmatpush1.bf16.msra.mxu0 0
    %704 = vmatprep.subr.bf16.mxu0 0
    %705 = vmatpush1.bf16.msra.mxu0 0
    %706 = vmatprep.subr.bf16.mxu0 0
    %707 = vmatpush1.bf16.msra.mxu0 0
    %708 = vmatprep.subr.bf16.mxu0 0
    %709 = vmatpush1.bf16.msra.mxu0 0
    %710 = vmatprep.subr.bf16.mxu0 0
    %711 = vmatpush1.bf16.msra.mxu0 0
    %712 = vmatprep.subr.bf16.mxu0 0
    %713 = vmatpush1.bf16.msra.mxu0 0
    %714 = vmatprep.subr.bf16.mxu0 0
    %715 = vmatpush1.bf16.msra.mxu0 0
    %716 = vmatprep.subr.bf16.mxu0 0
    %717 = vmatpush1.bf16.msra.mxu0 0
    %718 = vmatprep.subr.bf16.mxu0 0
    %719 = vmatpush1.bf16.msra.mxu0 0
    %720 = vmatprep.subr.bf16.mxu0 0
    %721 = vmatpush1.bf16.msra.mxu0 0
    %722 = vmatprep.subr.bf16.mxu0 0
    %723 = vmatpush1.bf16.msra.mxu0 0
    %724 = vmatprep.mubr.bf16.mxu0 0
    %725 = vmatmul.mubr.bf16.gmra.mrb[0].mxu0 %v687
    %v726 = vpop.f32.mrb[0].mxu0
    %v727 = vadd.f32 %v658, %v726
    %v728 = vpop.f32.mrb[0].mxu0
    %v729 = vadd.f32 %v658, %v728
    %v730 = vpop.f32.mrb[0].mxu0
    %v731 = vadd.f32 %v663, %v730
    %v732 = vpop.f32.mrb[0].mxu0
    %v733 = vadd.f32 %v663, %v732
    %734 = vmatprep.mubr.bf16.mxu0 0
    %735 = vmatmul.mubr.bf16.gmra.mrb[0].mxu0 %v690
    %v736 = vpop.f32.mrb[0].mxu0
    %v737 = vadd.f32 %v668, %v736
    %v738 = vpop.f32.mrb[0].mxu0
    %v739 = vadd.f32 %v668, %v738
    %v740 = vpop.f32.mrb[0].mxu0
    %v741 = vadd.f32 %v673, %v740
    %v742 = vpop.f32.mrb[0].mxu0
    %v743 = vadd.f32 %v673, %v742
    %744 = vdwg.mxu0
    %v745 = vmax.f32 %v727, 0.0
    %v746 = vmax.f32 %v729, 0.0
    %v747 = vmax.f32 %v731, 0.0
    %v748 = vmax.f32 %v733, 0.0
    %v749 = vmax.f32 %v737, 0.0
    %v750 = vmax.f32 %v739, 0.0
    %v751 = vmax.f32 %v741, 0.0
    %v752 = vmax.f32 %v743, 0.0
    %v753 = vpack.c.bf16 %v747, %v745
    %v754 = vpack.c.bf16 %v748, %v746
    %v755 = vpack.c.bf16 %v751, %v749
    %v756 = vpack.c.bf16 %v752, %v750
    %v757 = vld [vmem:[%s7] sm:$0x1]
    %v758 = vld [vmem:[#allocation2] sm:$0x1]
    %760 = vset.pattern.permute.xlu0 0
    %761 = vperm.xlu0 %760, %v758
    %v762 = vpop.permute.xlu0 %761
    %v764 = vlaneseq
    %v765 = vshrl.u32 %v764, 7
    %v766 = vsub.s32 0, %v765
    %v767 = vrot.slane %v762, %v766
    %v769 = vsel %vm236, %v757, 0
    %771 = vmatprep.subr.bf16.mxu0 %v754
    %772 = vmatpush1.bf16.msra.mxu0 %v753
    %773 = vmatprep.subr.bf16.mxu0 %v756
    %774 = vmatpush1.bf16.msra.mxu0 %v755
    %775 = vmatprep.subr.bf16.mxu0 0
    %776 = vmatpush1.bf16.msra.mxu0 0
    %777 = vmatprep.subr.bf16.mxu0 0
    %778 = vmatpush1.bf16.msra.mxu0 0
    %779 = vmatprep.subr.bf16.mxu0 0
    %780 = vmatpush1.bf16.msra.mxu0 0
    %781 = vmatprep.subr.bf16.mxu0 0
    %782 = vmatpush1.bf16.msra.mxu0 0
    %783 = vmatprep.subr.bf16.mxu0 0
    %784 = vmatpush1.bf16.msra.mxu0 0
    %785 = vmatprep.subr.bf16.mxu0 0
    %786 = vmatpush1.bf16.msra.mxu0 0
    %787 = vmatprep.subr.bf16.mxu0 0
    %788 = vmatpush1.bf16.msra.mxu0 0
    %789 = vmatprep.subr.bf16.mxu0 0
    %790 = vmatpush1.bf16.msra.mxu0 0
    %791 = vmatprep.subr.bf16.mxu0 0
    %792 = vmatpush1.bf16.msra.mxu0 0
    %793 = vmatprep.subr.bf16.mxu0 0
    %794 = vmatpush1.bf16.msra.mxu0 0
    %795 = vmatprep.subr.bf16.mxu0 0
    %796 = vmatpush1.bf16.msra.mxu0 0
    %797 = vmatprep.subr.bf16.mxu0 0
    %798 = vmatpush1.bf16.msra.mxu0 0
    %799 = vmatprep.subr.bf16.mxu0 0
    %800 = vmatpush1.bf16.msra.mxu0 0
    %801 = vmatprep.subr.bf16.mxu0 0
    %802 = vmatpush1.bf16.msra.mxu0 0
    %803 = vmatprep.mubr.bf16.mxu0 0
    %804 = vmatmul.mubr.bf16.gmra.mrb[0].mxu0 %v769
    %v805 = vpop.f32.mrb[0].mxu0
    %v806 = vadd.f32 %v767, %v805
    %v807 = vpop.f32.mrb[0].mxu0
    %v808 = vadd.f32 %v767, %v807
    %v809 = vpop.f32.mrb[0].mxu0
    %v810 = vpop.f32.mrb[0].mxu0
    %811 = vdwg.mxu0
    %v812 = vand.u32 2147483647, %v806
    %v813 = vand.u32 2147483647, %v808
    %v814 = vsub.f32 0.0, %v812
    %v815 = vsub.f32 0.0, %v813
    %v816 = vmul.f32 %v814, 1.442695
    %v817 = vpow.pop %v816
    %v818 = vmul.f32 %v815, 1.442695
    %v819 = vpow.pop %v818
    %v820 = vadd.f32 %v817, 1.0
    %v821 = vadd.f32 %v819, 1.0
    %v822 = vrcp.pop %v820
    %v823 = vrcp.pop %v821
    %vm824 = vcmp.ge.f32.partialorder %v806, 0.0
    %vm825 = vcmp.ge.f32.partialorder %v808, 0.0
    %v826 = vmul.f32 %v817, %v822
    %v827 = vmul.f32 %v819, %v823
    %v828 = vsel %vm824, %v822, %v826
    %v829 = vsel %vm825, %v823, %v827
    %v832 = vcombine.low %v828, %v829
    %v834 = vunpack.c.l.s4 1966171168
    %v835 = vunpack.c.0.s8 %v834
    %v836 = vlaneseq
    %v837 = vshrl.u32 %v836, 7
    %v838 = vsub.s32 %v835, %v837
    %v839 = vrot.slane %v832, %v838
    %v841 = vunpack.c.l.s4 1966171168
    %v842 = vunpack.c.0.s8 %v841
    %v843 = vlaneseq
    %v844 = vshrl.u32 %v843, 7
    %v845 = vsub.s32 %v842, %v844
    %v846 = vrot.slane %v839, %v845
    %v848 = vlaneseq
    %vm849 = vcmp.ge.s32.totalorder %v848, 0
    %vm850 = vcmp.lt.s32.totalorder %v848, 256
    %vm851 = vmand %vm849, %vm850
    %852 = vst.msk [vmem:[#allocation3] sm:$0x3] %vm851, %v846
    // Predicated region
    $region38: #{tpu_custom_call.1} parent=1 // pred_check
      _
    $region39: #{tpu_custom_call.1} parent=1 // pred_check_branch
      %854 = sbr.rel (0) target = $region41
    $region40: #{tpu_custom_call.1} parent=1 // pred_region
      %s856 = ssub.s32 32, 32
      %857 = vsyncadd [#allocation4], %s856
      %s859 = sshll.u32 [#allocation3], 4
      %s860 = int_to_ptr.vmem [resolvable:$true] %s859
      %862 = dma.vmem_to_hbm [thread:$0]  %s860, 32, %s9, [#allocation4]
    $region41: #{tpu_custom_call.1} parent=1 // pred_fallthru
      _
    // Predicated region
    $region42: #{tpu_custom_call.1} parent=1 // pred_check
      _
    $region43: #{tpu_custom_call.1} parent=1 // pred_check_branch
      %864 = sbr.rel (0) target = $region45
    $region44: #{tpu_custom_call.1} parent=1 // pred_region
      %865 = dma.done [#allocation4], 32
    $region45: #{tpu_custom_call.1} parent=1 // pred_fallthru
      _
    %866 = vsyncpa [#allocation4], 1

</llo_original>
